<compile_context>
chip_gen: v7x
topology: tpu7x:2x2x1
jax: 0.10.0
libtpu: 0.0.40
codegen_flags: <defaults>
</compile_context>

<pallas_src>
import functools

import jax
import jax.numpy as jnp
from jax.experimental import pallas as pl
from jax.experimental.pallas import tpu as pltpu

LANE = 128


# ---------------------------------------------------------------------------
# Pallas kernel: one fused (reparam'd) conv-as-matmul + bias + ReLU
# ---------------------------------------------------------------------------

def _rep_block_kernel(xcol_ref, w_ref, b_ref, o_ref):
    y = jnp.dot(xcol_ref[...], w_ref[...], preferred_element_type=jnp.float32)
    y = y + b_ref[...]
    o_ref[...] = jnp.maximum(y, 0.0).astype(o_ref.dtype)


def _round_up(x, m):
    return (x + m - 1) // m * m


def _choose_tile_m(m, k, cout_pad, in_itemsize, budget_bytes=10 << 20):
    # Double-buffered input tile + f32 output tile per grid step.
    per_row = 2 * (k * in_itemsize + cout_pad * 4)
    tile = budget_bytes // max(per_row, 1)
    tile = max(8, min(1024, (tile // 8) * 8))
    tile = min(tile, _round_up(m, 8))
    return tile


def _fused_conv_bias_relu(xcol, w_pad, b_pad):
    """xcol: (M, K), w_pad: (K, Cout_pad), b_pad: (1, Cout_pad) f32."""
    m, k = xcol.shape
    cout_pad = w_pad.shape[1]
    in_itemsize = jnp.dtype(xcol.dtype).itemsize

    tile_m = _choose_tile_m(m, k, cout_pad, in_itemsize)
    m_pad = _round_up(m, tile_m)
    if m_pad != m:
        xcol = jnp.pad(xcol, ((0, m_pad - m), (0, 0)))

    grid = (m_pad // tile_m,)
    flops = 2 * m_pad * k * cout_pad
    bytes_accessed = (m_pad * k * in_itemsize
                      + w_pad.size * jnp.dtype(w_pad.dtype).itemsize
                      + b_pad.size * 4
                      + m_pad * cout_pad * 4)

    out = pl.pallas_call(
        _rep_block_kernel,
        grid=grid,
        in_specs=[
            pl.BlockSpec((tile_m, k), lambda i: (i, 0)),        # streamed
            pl.BlockSpec((k, cout_pad), lambda i: (0, 0)),      # resident
            pl.BlockSpec((1, cout_pad), lambda i: (0, 0)),      # resident
        ],
        out_specs=pl.BlockSpec((tile_m, cout_pad), lambda i: (i, 0)),
        out_shape=jax.ShapeDtypeStruct((m_pad, cout_pad), jnp.float32),
        compiler_params=pltpu.CompilerParams(
            dimension_semantics=("parallel",),
            vmem_limit_bytes=32 << 20,
        ),
        cost_estimate=pl.CostEstimate(
            flops=flops, transcendentals=0, bytes_accessed=bytes_accessed),
    )(xcol, w_pad, b_pad)
    return out[:m]


# ---------------------------------------------------------------------------
# Glue: im2col, BN folding, branch-fold (reparam), block / stage wrappers
# ---------------------------------------------------------------------------

def _im2col_3x3(x_nhwc, stride):
    """3x3, padding=1, given stride. Returns (M, 9*Cin), output spatial dims."""
    n, h, w, c = x_nhwc.shape
    ho = (h + 2 - 3) // stride + 1
    wo = (w + 2 - 3) // stride + 1
    xp = jnp.pad(x_nhwc, ((0, 0), (1, 1), (1, 1), (0, 0)))
    views = []
    for dy in range(3):
        for dx in range(3):
            v = xp[:, dy:dy + stride * (ho - 1) + 1:stride,
                      dx:dx + stride * (wo - 1) + 1:stride, :]
            views.append(v)
    xcol = jnp.concatenate(views, axis=-1)            # (N, Ho, Wo, 9*Cin)
    return xcol.reshape(n * ho * wo, 9 * c), (n, ho, wo)


def _bn_scale_shift(bn, eps=1e-5):
    scale = bn["gamma"] / jnp.sqrt(bn["var"] + eps)
    shift = bn["beta"] - bn["mean"] * scale
    return scale, shift


def _reparam_down(p):
    """bn3(conv3) + bn1(conv1) folded into a single 3x3 weight + bias."""
    cin, cout = p["w1"].shape
    s3, b3 = _bn_scale_shift(p["bn3"])
    s1, b1 = _bn_scale_shift(p["bn1"])
    w = p["w3"] * s3[None, None, None, :]                 # (3,3,Cin,Cout)
    w = w.at[1, 1].add(p["w1"] * s1[None, :])             # 1x1 -> center tap
    return w.reshape(9 * cin, cout), b3 + b1


def _reparam_identity(p):
    """bn3(conv3) + bn1(conv1) + bn0(x) folded into one 3x3 weight + bias."""
    c = p["w1"].shape[0]
    s3, b3 = _bn_scale_shift(p["bn3"])
    s1, b1 = _bn_scale_shift(p["bn1"])
    s0, b0 = _bn_scale_shift(p["bn0"])
    w = p["w3"] * s3[None, None, None, :]                 # (3,3,C,C)
    center = p["w1"] * s1[None, :] + jnp.eye(c, dtype=w.dtype) * s0[None, :]
    w = w.at[1, 1].add(center)
    return w.reshape(9 * c, c), b3 + b1 + b0


def _block_fwd(x_nhwc, w_folded, bias, stride, cout, compute_dtype):
    xcol, (n, ho, wo) = _im2col_3x3(x_nhwc, stride)
    k = xcol.shape[1]
    cout_pad = _round_up(cout, LANE)                      # lane-dense output
    w_pad = jnp.zeros((k, cout_pad), compute_dtype)
    w_pad = w_pad.at[:, :cout].set(w_folded.astype(compute_dtype))
    b_pad = jnp.zeros((1, cout_pad), jnp.float32)
    b_pad = b_pad.at[0, :cout].set(bias.astype(jnp.float32))
    out = _fused_conv_bias_relu(xcol.astype(compute_dtype), w_pad, b_pad)
    return out[:, :cout].reshape(n, ho, wo, cout)


def repvgg_stage_forward(x_nchw, stage_params, stride=2,
                         compute_dtype=jnp.float32):
    """RepVGGStage.forward (non-reparam path, BN in eval mode)."""
    x = jnp.transpose(x_nchw, (0, 2, 3, 1))               # NCHW -> NHWC
    pd = stage_params["down"]
    w, b = _reparam_down(pd)
    x = _block_fwd(x, w, b, stride, pd["w1"].shape[1], compute_dtype)
    for bp in stage_params["blocks"]:
        w, b = _reparam_identity(bp)
        x = _block_fwd(x, w, b, 1, bp["w1"].shape[1], compute_dtype)
    return jnp.transpose(x, (0, 3, 1, 2))                 # NHWC -> NCHW


# ---------------------------------------------------------------------------
# Deterministic parameter init (mirrors the shapes in __init__)
# ---------------------------------------------------------------------------

def _init_bn(key, c):
    k1, k2, k3, k4 = jax.random.split(key, 4)
    return {
        "gamma": 1.0 + 0.1 * jax.random.normal(k1, (c,), jnp.float32),
        "beta": 0.1 * jax.random.normal(k2, (c,), jnp.float32),
        "mean": 0.1 * jax.random.normal(k3, (c,), jnp.float32),
        "var": 0.5 + jnp.abs(jax.random.normal(k4, (c,), jnp.float32)),
    }


def _init_down_block(key, cin, cout):
    k1, k2, k3, k4 = jax.random.split(key, 4)
    return {
        "w3": 0.1 * jax.random.normal(k1, (3, 3, cin, cout), jnp.float32),
        "w1": 0.1 * jax.random.normal(k2, (cin, cout), jnp.float32),
        "bn3": _init_bn(k3, cout),
        "bn1": _init_bn(k4, cout),
    }


def _init_repvgg_block(key, c):
    k1, k2, k3, k4, k5 = jax.random.split(key, 5)
    return {
        "w3": 0.1 * jax.random.normal(k1, (3, 3, c, c), jnp.float32),
        "w1": 0.1 * jax.random.normal(k2, (c, c), jnp.float32),
        "bn3": _init_bn(k3, c),
        "bn1": _init_bn(k4, c),
        "bn0": _init_bn(k5, c),
    }


def init_stage_params(key, in_channels, out_channels, num_blocks):
    keys = jax.random.split(key, num_blocks)
    return {
        "down": _init_down_block(keys[0], in_channels, out_channels),
        "blocks": [_init_repvgg_block(keys[i], out_channels)
                   for i in range(1, num_blocks)],
    }


# ---------------------------------------------------------------------------

if __name__ == "__main__":
    key = jax.random.PRNGKey(0)
    kx, kp = jax.random.split(key)

    # RepVGGStage(in_channels=4, out_channels=8, N=2, stride=2)
    in_channels, out_channels, num_blocks, stride = 4, 8, 2, 2
    x = jax.random.normal(kx, (2, in_channels, 16, 16), jnp.float32)  # NCHW

    params = init_stage_params(kp, in_channels, out_channels, num_blocks)

    fwd = jax.jit(functools.partial(repvgg_stage_forward, stride=stride))
    y = fwd(x, params)
    jax.block_until_ready(y)

    assert y.shape == (2, out_channels, 8, 8), y.shape
    assert bool(jnp.all(y >= 0.0))  # ReLU output
    print("KERNEL_OK")
</pallas_src>

<mosaic_0001>
module attributes {stable_mosaic.version = 11 : i64} {
  func.func @_rep_block_kernel(%arg0: i32, %arg1: memref<128x36xf32, #tpu.memory_space<vmem>>, %arg2: memref<36x128xf32, #tpu.memory_space<vmem>>, %arg3: memref<1x128xf32, #tpu.memory_space<vmem>>, %arg4: memref<128x128xf32, #tpu.memory_space<vmem>>) attributes {dimension_semantics = [#tpu.dimension_semantics<parallel>], iteration_bounds = array<i64: 1>, scalar_prefetch = 0 : i64, scratch_operands = 0 : i64, tpu.core_type = #tpu.core_type<tc>, window_params = [{transform_indices = @transform_0, window_bounds = array<i64: 128, 36>}, {pipeline_mode = #tpu.pipeline_mode<synchronous>, transform_indices = @transform_1, window_bounds = array<i64: 36, 128>}, {pipeline_mode = #tpu.pipeline_mode<synchronous>, transform_indices = @transform_2, window_bounds = array<i64: 1, 128>}, {transform_indices = @transform_3, window_bounds = array<i64: 128, 128>}]} {
    %c0 = arith.constant 0 : index
    %c0_0 = arith.constant 0 : index
    %0 = vector.load %arg1[%c0, %c0_0] : memref<128x36xf32, #tpu.memory_space<vmem>>, vector<128x36xf32>
    %c0_1 = arith.constant 0 : index
    %c0_2 = arith.constant 0 : index
    %1 = vector.load %arg2[%c0_1, %c0_2] : memref<36x128xf32, #tpu.memory_space<vmem>>, vector<36x128xf32>
    %cst = arith.constant dense<0.000000e+00> : vector<128x128xf32>
    %2 = tpu.matmul %0, %1, %cst {dimension_numbers = #tpu.dot_dimension_numbers<[1], [0], [0], [1], [0, 0, 1, 1], [], []>} : vector<128x36xf32>, vector<36x128xf32>, vector<128x128xf32> -> vector<128x128xf32>
    %c0_3 = arith.constant 0 : index
    %c0_4 = arith.constant 0 : index
    %3 = vector.load %arg3[%c0_3, %c0_4] : memref<1x128xf32, #tpu.memory_space<vmem>>, vector<1x128xf32>
    %4 = vector.broadcast %3 : vector<1x128xf32> to vector<128x128xf32>
    %5 = arith.addf %2, %4 : vector<128x128xf32>
    %cst_5 = arith.constant 0.000000e+00 : f32
    %6 = vector.broadcast %cst_5 : f32 to vector<128x128xf32>
    %7 = arith.maximumf %5, %6 : vector<128x128xf32>
    %c0_6 = arith.constant 0 : index
    %c0_7 = arith.constant 0 : index
    %8 = vector.load %arg4[%c0_6, %c0_7] : memref<128x128xf32, #tpu.memory_space<vmem>>, vector<128x128xf32>
    tpu.vector_store %arg4[%c0_6, %c0_7], %7 {strides = array<i32>} : memref<128x128xf32, #tpu.memory_space<vmem>>, vector<128x128xf32>,
    return
  }
  func.func @transform_0(%arg0: i32) -> (i32, i32) {
    %c0_i32 = arith.constant 0 : i32
    %c0_i32_0 = arith.constant 0 : i32
    return %arg0, %c0_i32 : i32, i32
  }
  func.func @transform_1(%arg0: i32) -> (i32, i32) {
    %c0_i32 = arith.constant 0 : i32
    %c0_i32_0 = arith.constant 0 : i32
    %c0_i32_1 = arith.constant 0 : i32
    return %c0_i32, %c0_i32_0 : i32, i32
  }
  func.func @transform_2(%arg0: i32) -> (i32, i32) {
    %c0_i32 = arith.constant 0 : i32
    %c0_i32_0 = arith.constant 0 : i32
    %c0_i32_1 = arith.constant 0 : i32
    return %c0_i32, %c0_i32_0 : i32, i32
  }
  func.func @transform_3(%arg0: i32) -> (i32, i32) {
    %c0_i32 = arith.constant 0 : i32
    %c0_i32_0 = arith.constant 0 : i32
    return %arg0, %c0_i32 : i32, i32
  }
}

module attributes {stable_mosaic.version = 11 : i64} {
  func.func @_rep_block_kernel(%arg0: i32, %arg1: memref<128x72xf32, #tpu.memory_space<vmem>>, %arg2: memref<72x128xf32, #tpu.memory_space<vmem>>, %arg3: memref<1x128xf32, #tpu.memory_space<vmem>>, %arg4: memref<128x128xf32, #tpu.memory_space<vmem>>) attributes {dimension_semantics = [#tpu.dimension_semantics<parallel>], iteration_bounds = array<i64: 1>, scalar_prefetch = 0 : i64, scratch_operands = 0 : i64, tpu.core_type = #tpu.core_type<tc>, window_params = [{transform_indices = @transform_0, window_bounds = array<i64: 128, 72>}, {pipeline_mode = #tpu.pipeline_mode<synchronous>, transform_indices = @transform_1, window_bounds = array<i64: 72, 128>}, {pipeline_mode = #tpu.pipeline_mode<synchronous>, transform_indices = @transform_2, window_bounds = array<i64: 1, 128>}, {transform_indices = @transform_3, window_bounds = array<i64: 128, 128>}]} {
    %c0 = arith.constant 0 : index
    %c0_0 = arith.constant 0 : index
    %0 = vector.load %arg1[%c0, %c0_0] : memref<128x72xf32, #tpu.memory_space<vmem>>, vector<128x72xf32>
    %c0_1 = arith.constant 0 : index
    %c0_2 = arith.constant 0 : index
    %1 = vector.load %arg2[%c0_1, %c0_2] : memref<72x128xf32, #tpu.memory_space<vmem>>, vector<72x128xf32>
    %cst = arith.constant dense<0.000000e+00> : vector<128x128xf32>
    %2 = tpu.matmul %0, %1, %cst {dimension_numbers = #tpu.dot_dimension_numbers<[1], [0], [0], [1], [0, 0, 1, 1], [], []>} : vector<128x72xf32>, vector<72x128xf32>, vector<128x128xf32> -> vector<128x128xf32>
    %c0_3 = arith.constant 0 : index
    %c0_4 = arith.constant 0 : index
    %3 = vector.load %arg3[%c0_3, %c0_4] : memref<1x128xf32, #tpu.memory_space<vmem>>, vector<1x128xf32>
    %4 = vector.broadcast %3 : vector<1x128xf32> to vector<128x128xf32>
    %5 = arith.addf %2, %4 : vector<128x128xf32>
    %cst_5 = arith.constant 0.000000e+00 : f32
    %6 = vector.broadcast %cst_5 : f32 to vector<128x128xf32>
    %7 = arith.maximumf %5, %6 : vector<128x128xf32>
    %c0_6 = arith.constant 0 : index
    %c0_7 = arith.constant 0 : index
    %8 = vector.load %arg4[%c0_6, %c0_7] : memref<128x128xf32, #tpu.memory_space<vmem>>, vector<128x128xf32>
    tpu.vector_store %arg4[%c0_6, %c0_7], %7 {strides = array<i32>} : memref<128x128xf32, #tpu.memory_space<vmem>>, vector<128x128xf32>,
    return
  }
  func.func @transform_0(%arg0: i32) -> (i32, i32) {
    %c0_i32 = arith.constant 0 : i32
    %c0_i32_0 = arith.constant 0 : i32
    return %arg0, %c0_i32 : i32, i32
  }
  func.func @transform_1(%arg0: i32) -> (i32, i32) {
    %c0_i32 = arith.constant 0 : i32
    %c0_i32_0 = arith.constant 0 : i32
    %c0_i32_1 = arith.constant 0 : i32
    return %c0_i32, %c0_i32_0 : i32, i32
  }
  func.func @transform_2(%arg0: i32) -> (i32, i32) {
    %c0_i32 = arith.constant 0 : i32
    %c0_i32_0 = arith.constant 0 : i32
    %c0_i32_1 = arith.constant 0 : i32
    return %c0_i32, %c0_i32_0 : i32, i32
  }
  func.func @transform_3(%arg0: i32) -> (i32, i32) {
    %c0_i32 = arith.constant 0 : i32
    %c0_i32_0 = arith.constant 0 : i32
    return %arg0, %c0_i32 : i32, i32
  }
}

</mosaic_0001>

<llo_original>
// kernel: repvgg_stage_forward.2
$region0: #{repvgg_stage_forward.2}
  #allocation0 [shape = 'u32[]', space=smem, size = 0x4, offset = 0x4, fixed_abs, tag = 'smem constant byte address 0x4 - core index']
  #allocation1 [shape = 'u32[144,128]{1,0:T(1,128)}', space=vmem, size = 0x12000, scoped, tag = 'internal scratch']
  %s0 = inlined_call_operand.vmem [shape: f32[128,36], index: 0, kind: input, shape index: {}]
  %s1 = inlined_call_operand.vmem [shape: f32[36,128], index: 1, kind: input, shape index: {}]
  %s2 = inlined_call_operand.vmem [shape: f32[1,128], index: 2, kind: input, shape index: {}]
  %s3 = inlined_call_operand.vmem [shape: f32[128,128], index: 3, kind: output, shape index: {}]
  %s4 = sld [smem:[#allocation0]]
  $region22: #{repvgg_stage_forward.2} parent=0
    _
  %s6 = ssub.s32 1, %s4
  %s7 = scalar_select 0, %s6, %s4
  // Predicated region
  $region2: #{repvgg_stage_forward.2} parent=0 // pred_check
    _
  $region3: #{repvgg_stage_forward.2} parent=0 // pred_check_branch
    %9 = sbr.rel (0) target = $region5
  $region4: #{repvgg_stage_forward.2} parent=0 // pred_region
    _
  $region5: #{repvgg_stage_forward.2} parent=0 // pred_fallthru
    _
  // Predicated region
  $region6: #{repvgg_stage_forward.2} parent=0 // pred_check
    _
  $region7: #{repvgg_stage_forward.2} parent=0 // pred_check_branch
    %11 = sbr.rel (0) target = $region9
  $region8: #{repvgg_stage_forward.2} parent=0 // pred_region
    _
  $region9: #{repvgg_stage_forward.2} parent=0 // pred_fallthru
    _
  // Predicated region
  $region10: #{repvgg_stage_forward.2} parent=0 // pred_check
    _
  $region11: #{repvgg_stage_forward.2} parent=0 // pred_check_branch
    %13 = sbr.rel (0) target = $region13
  $region12: #{repvgg_stage_forward.2} parent=0 // pred_region
    _
  $region13: #{repvgg_stage_forward.2} parent=0 // pred_fallthru
    _
  %v14 = vld [vmem:[%s0] sm:$0xff]
  %v15 = vld [vmem:[%s0 + $0x8] sm:$0xff]
  %v16 = vld [vmem:[%s0 + $0x10] sm:$0xff]
  %v17 = vld [vmem:[%s0 + $0x18] sm:$0xff]
  %v18 = vld [vmem:[%s0 + $0x20] sm:$0xff]
  %v19 = vld [vmem:[%s0 + $0x28] sm:$0xff]
  %v20 = vld [vmem:[%s0 + $0x30] sm:$0xff]
  %v21 = vld [vmem:[%s0 + $0x38] sm:$0xff]
  %v22 = vld [vmem:[%s0 + $0x40] sm:$0xff]
  %v23 = vld [vmem:[%s0 + $0x48] sm:$0xff]
  %v24 = vld [vmem:[%s0 + $0x50] sm:$0xff]
  %v25 = vld [vmem:[%s0 + $0x58] sm:$0xff]
  %v26 = vld [vmem:[%s0 + $0x60] sm:$0xff]
  %v27 = vld [vmem:[%s0 + $0x68] sm:$0xff]
  %v28 = vld [vmem:[%s0 + $0x70] sm:$0xff]
  %v29 = vld [vmem:[%s0 + $0x78] sm:$0xff]
  %v30 = vld [vmem:[%s1] sm:$0xff]
  %v31 = vld [vmem:[%s1 + $0x8] sm:$0xff]
  %v32 = vld [vmem:[%s1 + $0x10] sm:$0xff]
  %v33 = vld [vmem:[%s1 + $0x18] sm:$0xff]
  %v34 = vld [vmem:[%s1 + $0x20] sm:$0xf]
  %v35 = vld [vmem:[%s2] sm:$0x1]
  %v37 = vlaneseq
  %v38 = vshrl.u32 %v37, 7
  %v39 = vsub.s32 0, %v38
  %v40 = vrot.slane %v35, %v39
  %vm42 = vcmask 293888
  %v44 = vsel %vm42, %v14, 0
  %v47 = vsel %vm42, %v15, 0
  %v50 = vsel %vm42, %v16, 0
  %v53 = vsel %vm42, %v17, 0
  %v56 = vsel %vm42, %v18, 0
  %v59 = vsel %vm42, %v19, 0
  %v62 = vsel %vm42, %v20, 0
  %v65 = vsel %vm42, %v21, 0
  %v68 = vsel %vm42, %v22, 0
  %v71 = vsel %vm42, %v23, 0
  %v74 = vsel %vm42, %v24, 0
  %v77 = vsel %vm42, %v25, 0
  %v80 = vsel %vm42, %v26, 0
  %v83 = vsel %vm42, %v27, 0
  %v86 = vsel %vm42, %v28, 0
  %v89 = vsel %vm42, %v29, 0
  %vm91 = vcmask 1043456
  %v93 = vsel %vm91, %v34, 0
  %95 = vmatprep.subr.mxu0 0.0
  %96 = vmatpush1.msra.mxu0 %v30
  %97 = vmatprep.subr.mxu0 0.0
  %98 = vmatpush1.msra.mxu0 %v31
  %99 = vmatprep.subr.mxu0 0.0
  %100 = vmatpush1.msra.mxu0 %v32
  %101 = vmatprep.subr.mxu0 0.0
  %102 = vmatpush1.msra.mxu0 %v33
  %103 = vmatprep.subr.mxu0 0.0
  %104 = vmatpush1.msra.mxu0 %v93
  %105 = vmatprep.subr.mxu0 0.0
  %106 = vmatpush1.msra.mxu0 0.0
  %107 = vmatprep.subr.mxu0 0.0
  %108 = vmatpush1.msra.mxu0 0.0
  %109 = vmatprep.subr.mxu0 0.0
  %110 = vmatpush1.msra.mxu0 0.0
  %111 = vmatprep.subr.mxu0 0.0
  %112 = vmatpush1.msra.mxu0 0.0
  %113 = vmatprep.subr.mxu0 0.0
  %114 = vmatpush1.msra.mxu0 0.0
  %115 = vmatprep.subr.mxu0 0.0
  %116 = vmatpush1.msra.mxu0 0.0
  %117 = vmatprep.subr.mxu0 0.0
  %118 = vmatpush1.msra.mxu0 0.0
  %119 = vmatprep.subr.mxu0 0.0
  %120 = vmatpush1.msra.mxu0 0.0
  %121 = vmatprep.subr.mxu0 0.0
  %122 = vmatpush1.msra.mxu0 0.0
  %123 = vmatprep.subr.mxu0 0.0
  %124 = vmatpush1.msra.mxu0 0.0
  %125 = vmatprep.subr.mxu0 0.0
  %126 = vmatpush1.msra.mxu0 0.0
  %127 = vmatprep.subr.mxu0 0.0
  %128 = vmatpush1.msra.mxu0 0.0
  %129 = vmatprep.subr.mxu0 0.0
  %130 = vmatpush1.msra.mxu0 0.0
  %131 = vmatprep.subr.mxu0 0.0
  %132 = vmatpush1.msra.mxu0 0.0
  %133 = vmatprep.subr.mxu0 0.0
  %134 = vmatpush1.msra.mxu0 0.0
  %135 = vmatprep.subr.mxu0 0.0
  %136 = vmatpush1.msra.mxu0 0.0
  %137 = vmatprep.subr.mxu0 0.0
  %138 = vmatpush1.msra.mxu0 0.0
  %139 = vmatprep.subr.mxu0 0.0
  %140 = vmatpush1.msra.mxu0 0.0
  %141 = vmatprep.subr.mxu0 0.0
  %142 = vmatpush1.msra.mxu0 0.0
  %143 = vmatprep.subr.mxu0 0.0
  %144 = vmatpush1.msra.mxu0 0.0
  %145 = vmatprep.subr.mxu0 0.0
  %146 = vmatpush1.msra.mxu0 0.0
  %147 = vmatprep.subr.mxu0 0.0
  %148 = vmatpush1.msra.mxu0 0.0
  %149 = vmatprep.subr.mxu0 0.0
  %150 = vmatpush1.msra.mxu0 0.0
  %151 = vmatprep.subr.mxu0 0.0
  %152 = vmatpush1.msra.mxu0 0.0
  %153 = vmatprep.subr.mxu0 0.0
  %154 = vmatpush1.msra.mxu0 0.0
  %155 = vmatprep.subr.mxu0 0.0
  %156 = vmatpush1.msra.mxu0 0.0
  %157 = vmatprep.subr.mxu0 0.0
  %158 = vmatpush1.msra.mxu0 0.0
  %159 = vmatprep.mubr.f32.mxu0 0.0
  %160 = vmatmul.mubr.f32.gmra.mrb[0].mxu0 %v44
  %v161 = vpop.f32.mrb[0].mxu0
  %v162 = vadd.f32 %v40, %v161
  %v163 = vpop.f32.mrb[0].mxu0
  %164 = vmatprep.mubr.f32.mxu0 0.0
  %165 = vmatmul.mubr.f32.gmra.mrb[0].mxu0 %v47
  %v166 = vpop.f32.mrb[0].mxu0
  %v167 = vadd.f32 %v40, %v166
  %v168 = vpop.f32.mrb[0].mxu0
  %169 = vmatprep.mubr.f32.mxu0 0.0
  %170 = vmatmul.mubr.f32.gmra.mrb[0].mxu0 %v50
  %v171 = vpop.f32.mrb[0].mxu0
  %v172 = vadd.f32 %v40, %v171
  %v173 = vpop.f32.mrb[0].mxu0
  %174 = vmatprep.mubr.f32.mxu0 0.0
  %175 = vmatmul.mubr.f32.gmra.mrb[0].mxu0 %v53
  %v176 = vpop.f32.mrb[0].mxu0
  %v177 = vadd.f32 %v40, %v176
  %v178 = vpop.f32.mrb[0].mxu0
  %179 = vmatprep.mubr.f32.mxu0 0.0
  %180 = vmatmul.mubr.f32.gmra.mrb[0].mxu0 %v56
  %v181 = vpop.f32.mrb[0].mxu0
  %v182 = vadd.f32 %v40, %v181
  %v183 = vpop.f32.mrb[0].mxu0
  %184 = vmatprep.mubr.f32.mxu0 0.0
  %185 = vmatmul.mubr.f32.gmra.mrb[0].mxu0 %v59
  %v186 = vpop.f32.mrb[0].mxu0
  %v187 = vadd.f32 %v40, %v186
  %v188 = vpop.f32.mrb[0].mxu0
  %189 = vmatprep.mubr.f32.mxu0 0.0
  %190 = vmatmul.mubr.f32.gmra.mrb[0].mxu0 %v62
  %v191 = vpop.f32.mrb[0].mxu0
  %v192 = vadd.f32 %v40, %v191
  %v193 = vpop.f32.mrb[0].mxu0
  %194 = vmatprep.mubr.f32.mxu0 0.0
  %195 = vmatmul.mubr.f32.gmra.mrb[0].mxu0 %v65
  %v196 = vpop.f32.mrb[0].mxu0
  %v197 = vadd.f32 %v40, %v196
  %v198 = vpop.f32.mrb[0].mxu0
  %199 = vmatprep.mubr.f32.mxu0 0.0
  %200 = vmatmul.mubr.f32.gmra.mrb[0].mxu0 %v68
  %v201 = vpop.f32.mrb[0].mxu0
  %v202 = vadd.f32 %v40, %v201
  %v203 = vpop.f32.mrb[0].mxu0
  %204 = vmatprep.mubr.f32.mxu0 0.0
  %205 = vmatmul.mubr.f32.gmra.mrb[0].mxu0 %v71
  %v206 = vpop.f32.mrb[0].mxu0
  %v207 = vadd.f32 %v40, %v206
  %v208 = vpop.f32.mrb[0].mxu0
  %209 = vmatprep.mubr.f32.mxu0 0.0
  %210 = vmatmul.mubr.f32.gmra.mrb[0].mxu0 %v74
  %v211 = vpop.f32.mrb[0].mxu0
  %v212 = vadd.f32 %v40, %v211
  %v213 = vpop.f32.mrb[0].mxu0
  %214 = vmatprep.mubr.f32.mxu0 0.0
  %215 = vmatmul.mubr.f32.gmra.mrb[0].mxu0 %v77
  %v216 = vpop.f32.mrb[0].mxu0
  %v217 = vadd.f32 %v40, %v216
  %v218 = vpop.f32.mrb[0].mxu0
  %219 = vmatprep.mubr.f32.mxu0 0.0
  %220 = vmatmul.mubr.f32.gmra.mrb[0].mxu0 %v80
  %v221 = vpop.f32.mrb[0].mxu0
  %v222 = vadd.f32 %v40, %v221
  %v223 = vpop.f32.mrb[0].mxu0
  %224 = vmatprep.mubr.f32.mxu0 0.0
  %225 = vmatmul.mubr.f32.gmra.mrb[0].mxu0 %v83
  %v226 = vpop.f32.mrb[0].mxu0
  %v227 = vadd.f32 %v40, %v226
  %v228 = vpop.f32.mrb[0].mxu0
  %229 = vmatprep.mubr.f32.mxu0 0.0
  %230 = vmatmul.mubr.f32.gmra.mrb[0].mxu0 %v86
  %v231 = vpop.f32.mrb[0].mxu0
  %v232 = vadd.f32 %v40, %v231
  %v233 = vpop.f32.mrb[0].mxu0
  %234 = vmatprep.mubr.f32.mxu0 0.0
  %235 = vmatmul.mubr.f32.gmra.mrb[0].mxu0 %v89
  %v236 = vpop.f32.mrb[0].mxu0
  %v237 = vadd.f32 %v40, %v236
  %v238 = vpop.f32.mrb[0].mxu0
  %239 = vdwg.mxu0
  %v240 = vmax.f32 %v162, 0.0
  %v241 = vmax.f32 %v167, 0.0
  %v242 = vmax.f32 %v172, 0.0
  %v243 = vmax.f32 %v177, 0.0
  %v244 = vmax.f32 %v182, 0.0
  %v245 = vmax.f32 %v187, 0.0
  %v246 = vmax.f32 %v192, 0.0
  %v247 = vmax.f32 %v197, 0.0
  %v248 = vmax.f32 %v202, 0.0
  %v249 = vmax.f32 %v207, 0.0
  %v250 = vmax.f32 %v212, 0.0
  %v251 = vmax.f32 %v217, 0.0
  %v252 = vmax.f32 %v222, 0.0
  %v253 = vmax.f32 %v227, 0.0
  %v254 = vmax.f32 %v232, 0.0
  %v255 = vmax.f32 %v237, 0.0
  %256 = vst [vmem:[%s3] sm:$0xff] %v240
  %257 = vst [vmem:[%s3 + $0x8] sm:$0xff] %v241
  %258 = vst [vmem:[%s3 + $0x10] sm:$0xff] %v242
  %259 = vst [vmem:[%s3 + $0x18] sm:$0xff] %v243
  %260 = vst [vmem:[%s3 + $0x20] sm:$0xff] %v244
  %261 = vst [vmem:[%s3 + $0x28] sm:$0xff] %v245
  %262 = vst [vmem:[%s3 + $0x30] sm:$0xff] %v246
  %263 = vst [vmem:[%s3 + $0x38] sm:$0xff] %v247
  %264 = vst [vmem:[%s3 + $0x40] sm:$0xff] %v248
  %265 = vst [vmem:[%s3 + $0x48] sm:$0xff] %v249
  %266 = vst [vmem:[%s3 + $0x50] sm:$0xff] %v250
  %267 = vst [vmem:[%s3 + $0x58] sm:$0xff] %v251
  %268 = vst [vmem:[%s3 + $0x60] sm:$0xff] %v252
  %269 = vst [vmem:[%s3 + $0x68] sm:$0xff] %v253
  %270 = vst [vmem:[%s3 + $0x70] sm:$0xff] %v254
  %271 = vst [vmem:[%s3 + $0x78] sm:$0xff] %v255
  // Predicated region
  $region14: #{repvgg_stage_forward.2} parent=0 // pred_check
    _
  $region15: #{repvgg_stage_forward.2} parent=0 // pred_check_branch
    %273 = sbr.rel (0) target = $region17
  $region16: #{repvgg_stage_forward.2} parent=0 // pred_region
    _
  $region17: #{repvgg_stage_forward.2} parent=0 // pred_fallthru
    _
  // Predicated region
  $region18: #{repvgg_stage_forward.2} parent=0 // pred_check
    _
  $region19: #{repvgg_stage_forward.2} parent=0 // pred_check_branch
    %275 = sbr.rel (0) target = $region21
  $region20: #{repvgg_stage_forward.2} parent=0 // pred_region
    _
  $region21: #{repvgg_stage_forward.2} parent=0 // pred_fallthru
    _

// kernel: repvgg_stage_forward.3
$region0: #{repvgg_stage_forward.3}
  #allocation0 [shape = 'u32[]', space=smem, size = 0x4, offset = 0x4, fixed_abs, tag = 'smem constant byte address 0x4 - core index']
  #allocation1 [shape = 'u32[144,128]{1,0:T(1,128)}', space=vmem, size = 0x12000, scoped, tag = 'internal scratch']
  %s0 = inlined_call_operand.vmem [shape: f32[128,72], index: 0, kind: input, shape index: {}]
  %s1 = inlined_call_operand.vmem [shape: f32[72,128], index: 1, kind: input, shape index: {}]
  %s2 = inlined_call_operand.vmem [shape: f32[1,128], index: 2, kind: input, shape index: {}]
  %s3 = inlined_call_operand.vmem [shape: f32[128,128], index: 3, kind: output, shape index: {}]
  %s4 = sld [smem:[#allocation0]]
  $region22: #{repvgg_stage_forward.3} parent=0
    _
  %s6 = ssub.s32 1, %s4
  %s7 = scalar_select 0, %s6, %s4
  // Predicated region
  $region2: #{repvgg_stage_forward.3} parent=0 // pred_check
    _
  $region3: #{repvgg_stage_forward.3} parent=0 // pred_check_branch
    %9 = sbr.rel (0) target = $region5
  $region4: #{repvgg_stage_forward.3} parent=0 // pred_region
    _
  $region5: #{repvgg_stage_forward.3} parent=0 // pred_fallthru
    _
  // Predicated region
  $region6: #{repvgg_stage_forward.3} parent=0 // pred_check
    _
  $region7: #{repvgg_stage_forward.3} parent=0 // pred_check_branch
    %11 = sbr.rel (0) target = $region9
  $region8: #{repvgg_stage_forward.3} parent=0 // pred_region
    _
  $region9: #{repvgg_stage_forward.3} parent=0 // pred_fallthru
    _
  // Predicated region
  $region10: #{repvgg_stage_forward.3} parent=0 // pred_check
    _
  $region11: #{repvgg_stage_forward.3} parent=0 // pred_check_branch
    %13 = sbr.rel (0) target = $region13
  $region12: #{repvgg_stage_forward.3} parent=0 // pred_region
    _
  $region13: #{repvgg_stage_forward.3} parent=0 // pred_fallthru
    _
  %v14 = vld [vmem:[%s0] sm:$0xff]
  %v15 = vld [vmem:[%s0 + $0x8] sm:$0xff]
  %v16 = vld [vmem:[%s0 + $0x10] sm:$0xff]
  %v17 = vld [vmem:[%s0 + $0x18] sm:$0xff]
  %v18 = vld [vmem:[%s0 + $0x20] sm:$0xff]
  %v19 = vld [vmem:[%s0 + $0x28] sm:$0xff]
  %v20 = vld [vmem:[%s0 + $0x30] sm:$0xff]
  %v21 = vld [vmem:[%s0 + $0x38] sm:$0xff]
  %v22 = vld [vmem:[%s0 + $0x40] sm:$0xff]
  %v23 = vld [vmem:[%s0 + $0x48] sm:$0xff]
  %v24 = vld [vmem:[%s0 + $0x50] sm:$0xff]
  %v25 = vld [vmem:[%s0 + $0x58] sm:$0xff]
  %v26 = vld [vmem:[%s0 + $0x60] sm:$0xff]
  %v27 = vld [vmem:[%s0 + $0x68] sm:$0xff]
  %v28 = vld [vmem:[%s0 + $0x70] sm:$0xff]
  %v29 = vld [vmem:[%s0 + $0x78] sm:$0xff]
  %v30 = vld [vmem:[%s1] sm:$0xff]
  %v31 = vld [vmem:[%s1 + $0x8] sm:$0xff]
  %v32 = vld [vmem:[%s1 + $0x10] sm:$0xff]
  %v33 = vld [vmem:[%s1 + $0x18] sm:$0xff]
  %v34 = vld [vmem:[%s1 + $0x20] sm:$0xff]
  %v35 = vld [vmem:[%s1 + $0x28] sm:$0xff]
  %v36 = vld [vmem:[%s1 + $0x30] sm:$0xff]
  %v37 = vld [vmem:[%s1 + $0x38] sm:$0xff]
  %v38 = vld [vmem:[%s1 + $0x40] sm:$0xff]
  %v39 = vld [vmem:[%s2] sm:$0x1]
  %v41 = vlaneseq
  %v42 = vshrl.u32 %v41, 7
  %v43 = vsub.s32 0, %v42
  %v44 = vrot.slane %v39, %v43
  %vm46 = vcmask 588800
  %v48 = vsel %vm46, %v14, 0
  %v51 = vsel %vm46, %v15, 0
  %v54 = vsel %vm46, %v16, 0
  %v57 = vsel %vm46, %v17, 0
  %v60 = vsel %vm46, %v18, 0
  %v63 = vsel %vm46, %v19, 0
  %v66 = vsel %vm46, %v20, 0
  %v69 = vsel %vm46, %v21, 0
  %v72 = vsel %vm46, %v22, 0
  %v75 = vsel %vm46, %v23, 0
  %v78 = vsel %vm46, %v24, 0
  %v81 = vsel %vm46, %v25, 0
  %v84 = vsel %vm46, %v26, 0
  %v87 = vsel %vm46, %v27, 0
  %v90 = vsel %vm46, %v28, 0
  %v93 = vsel %vm46, %v29, 0
  %95 = vmatprep.subr.mxu0 0.0
  %96 = vmatpush1.msra.mxu0 %v30
  %97 = vmatprep.subr.mxu0 0.0
  %98 = vmatpush1.msra.mxu0 %v31
  %99 = vmatprep.subr.mxu0 0.0
  %100 = vmatpush1.msra.mxu0 %v32
  %101 = vmatprep.subr.mxu0 0.0
  %102 = vmatpush1.msra.mxu0 %v33
  %103 = vmatprep.subr.mxu0 0.0
  %104 = vmatpush1.msra.mxu0 %v34
  %105 = vmatprep.subr.mxu0 0.0
  %106 = vmatpush1.msra.mxu0 %v35
  %107 = vmatprep.subr.mxu0 0.0
  %108 = vmatpush1.msra.mxu0 %v36
  %109 = vmatprep.subr.mxu0 0.0
  %110 = vmatpush1.msra.mxu0 %v37
  %111 = vmatprep.subr.mxu0 0.0
  %112 = vmatpush1.msra.mxu0 %v38
  %113 = vmatprep.subr.mxu0 0.0
  %114 = vmatpush1.msra.mxu0 0.0
  %115 = vmatprep.subr.mxu0 0.0
  %116 = vmatpush1.msra.mxu0 0.0
  %117 = vmatprep.subr.mxu0 0.0
  %118 = vmatpush1.msra.mxu0 0.0
  %119 = vmatprep.subr.mxu0 0.0
  %120 = vmatpush1.msra.mxu0 0.0
  %121 = vmatprep.subr.mxu0 0.0
  %122 = vmatpush1.msra.mxu0 0.0
  %123 = vmatprep.subr.mxu0 0.0
  %124 = vmatpush1.msra.mxu0 0.0
  %125 = vmatprep.subr.mxu0 0.0
  %126 = vmatpush1.msra.mxu0 0.0
  %127 = vmatprep.subr.mxu0 0.0
  %128 = vmatpush1.msra.mxu0 0.0
  %129 = vmatprep.subr.mxu0 0.0
  %130 = vmatpush1.msra.mxu0 0.0
  %131 = vmatprep.subr.mxu0 0.0
  %132 = vmatpush1.msra.mxu0 0.0
  %133 = vmatprep.subr.mxu0 0.0
  %134 = vmatpush1.msra.mxu0 0.0
  %135 = vmatprep.subr.mxu0 0.0
  %136 = vmatpush1.msra.mxu0 0.0
  %137 = vmatprep.subr.mxu0 0.0
  %138 = vmatpush1.msra.mxu0 0.0
  %139 = vmatprep.subr.mxu0 0.0
  %140 = vmatpush1.msra.mxu0 0.0
  %141 = vmatprep.subr.mxu0 0.0
  %142 = vmatpush1.msra.mxu0 0.0
  %143 = vmatprep.subr.mxu0 0.0
  %144 = vmatpush1.msra.mxu0 0.0
  %145 = vmatprep.subr.mxu0 0.0
  %146 = vmatpush1.msra.mxu0 0.0
  %147 = vmatprep.subr.mxu0 0.0
  %148 = vmatpush1.msra.mxu0 0.0
  %149 = vmatprep.subr.mxu0 0.0
  %150 = vmatpush1.msra.mxu0 0.0
  %151 = vmatprep.subr.mxu0 0.0
  %152 = vmatpush1.msra.mxu0 0.0
  %153 = vmatprep.subr.mxu0 0.0
  %154 = vmatpush1.msra.mxu0 0.0
  %155 = vmatprep.subr.mxu0 0.0
  %156 = vmatpush1.msra.mxu0 0.0
  %157 = vmatprep.subr.mxu0 0.0
  %158 = vmatpush1.msra.mxu0 0.0
  %159 = vmatprep.mubr.f32.mxu0 0.0
  %160 = vmatmul.mubr.f32.gmra.mrb[0].mxu0 %v48
  %v161 = vpop.f32.mrb[0].mxu0
  %v162 = vadd.f32 %v44, %v161
  %v163 = vpop.f32.mrb[0].mxu0
  %164 = vmatprep.mubr.f32.mxu0 0.0
  %165 = vmatmul.mubr.f32.gmra.mrb[0].mxu0 %v51
  %v166 = vpop.f32.mrb[0].mxu0
  %v167 = vadd.f32 %v44, %v166
  %v168 = vpop.f32.mrb[0].mxu0
  %169 = vmatprep.mubr.f32.mxu0 0.0
  %170 = vmatmul.mubr.f32.gmra.mrb[0].mxu0 %v54
  %v171 = vpop.f32.mrb[0].mxu0
  %v172 = vadd.f32 %v44, %v171
  %v173 = vpop.f32.mrb[0].mxu0
  %174 = vmatprep.mubr.f32.mxu0 0.0
  %175 = vmatmul.mubr.f32.gmra.mrb[0].mxu0 %v57
  %v176 = vpop.f32.mrb[0].mxu0
  %v177 = vadd.f32 %v44, %v176
  %v178 = vpop.f32.mrb[0].mxu0
  %179 = vmatprep.mubr.f32.mxu0 0.0
  %180 = vmatmul.mubr.f32.gmra.mrb[0].mxu0 %v60
  %v181 = vpop.f32.mrb[0].mxu0
  %v182 = vadd.f32 %v44, %v181
  %v183 = vpop.f32.mrb[0].mxu0
  %184 = vmatprep.mubr.f32.mxu0 0.0
  %185 = vmatmul.mubr.f32.gmra.mrb[0].mxu0 %v63
  %v186 = vpop.f32.mrb[0].mxu0
  %v187 = vadd.f32 %v44, %v186
  %v188 = vpop.f32.mrb[0].mxu0
  %189 = vmatprep.mubr.f32.mxu0 0.0
  %190 = vmatmul.mubr.f32.gmra.mrb[0].mxu0 %v66
  %v191 = vpop.f32.mrb[0].mxu0
  %v192 = vadd.f32 %v44, %v191
  %v193 = vpop.f32.mrb[0].mxu0
  %194 = vmatprep.mubr.f32.mxu0 0.0
  %195 = vmatmul.mubr.f32.gmra.mrb[0].mxu0 %v69
  %v196 = vpop.f32.mrb[0].mxu0
  %v197 = vadd.f32 %v44, %v196
  %v198 = vpop.f32.mrb[0].mxu0
  %199 = vmatprep.mubr.f32.mxu0 0.0
  %200 = vmatmul.mubr.f32.gmra.mrb[0].mxu0 %v72
  %v201 = vpop.f32.mrb[0].mxu0
  %v202 = vadd.f32 %v44, %v201
  %v203 = vpop.f32.mrb[0].mxu0
  %204 = vmatprep.mubr.f32.mxu0 0.0
  %205 = vmatmul.mubr.f32.gmra.mrb[0].mxu0 %v75
  %v206 = vpop.f32.mrb[0].mxu0
  %v207 = vadd.f32 %v44, %v206
  %v208 = vpop.f32.mrb[0].mxu0
  %209 = vmatprep.mubr.f32.mxu0 0.0
  %210 = vmatmul.mubr.f32.gmra.mrb[0].mxu0 %v78
  %v211 = vpop.f32.mrb[0].mxu0
  %v212 = vadd.f32 %v44, %v211
  %v213 = vpop.f32.mrb[0].mxu0
  %214 = vmatprep.mubr.f32.mxu0 0.0
  %215 = vmatmul.mubr.f32.gmra.mrb[0].mxu0 %v81
  %v216 = vpop.f32.mrb[0].mxu0
  %v217 = vadd.f32 %v44, %v216
  %v218 = vpop.f32.mrb[0].mxu0
  %219 = vmatprep.mubr.f32.mxu0 0.0
  %220 = vmatmul.mubr.f32.gmra.mrb[0].mxu0 %v84
  %v221 = vpop.f32.mrb[0].mxu0
  %v222 = vadd.f32 %v44, %v221
  %v223 = vpop.f32.mrb[0].mxu0
  %224 = vmatprep.mubr.f32.mxu0 0.0
  %225 = vmatmul.mubr.f32.gmra.mrb[0].mxu0 %v87
  %v226 = vpop.f32.mrb[0].mxu0
  %v227 = vadd.f32 %v44, %v226
  %v228 = vpop.f32.mrb[0].mxu0
  %229 = vmatprep.mubr.f32.mxu0 0.0
  %230 = vmatmul.mubr.f32.gmra.mrb[0].mxu0 %v90
  %v231 = vpop.f32.mrb[0].mxu0
  %v232 = vadd.f32 %v44, %v231
  %v233 = vpop.f32.mrb[0].mxu0
  %234 = vmatprep.mubr.f32.mxu0 0.0
  %235 = vmatmul.mubr.f32.gmra.mrb[0].mxu0 %v93
  %v236 = vpop.f32.mrb[0].mxu0
  %v237 = vadd.f32 %v44, %v236
  %v238 = vpop.f32.mrb[0].mxu0
  %239 = vdwg.mxu0
  %v240 = vmax.f32 %v162, 0.0
  %v241 = vmax.f32 %v167, 0.0
  %v242 = vmax.f32 %v172, 0.0
  %v243 = vmax.f32 %v177, 0.0
  %v244 = vmax.f32 %v182, 0.0
  %v245 = vmax.f32 %v187, 0.0
  %v246 = vmax.f32 %v192, 0.0
  %v247 = vmax.f32 %v197, 0.0
  %v248 = vmax.f32 %v202, 0.0
  %v249 = vmax.f32 %v207, 0.0
  %v250 = vmax.f32 %v212, 0.0
  %v251 = vmax.f32 %v217, 0.0
  %v252 = vmax.f32 %v222, 0.0
  %v253 = vmax.f32 %v227, 0.0
  %v254 = vmax.f32 %v232, 0.0
  %v255 = vmax.f32 %v237, 0.0
  %256 = vst [vmem:[%s3] sm:$0xff] %v240
  %257 = vst [vmem:[%s3 + $0x8] sm:$0xff] %v241
  %258 = vst [vmem:[%s3 + $0x10] sm:$0xff] %v242
  %259 = vst [vmem:[%s3 + $0x18] sm:$0xff] %v243
  %260 = vst [vmem:[%s3 + $0x20] sm:$0xff] %v244
  %261 = vst [vmem:[%s3 + $0x28] sm:$0xff] %v245
  %262 = vst [vmem:[%s3 + $0x30] sm:$0xff] %v246
  %263 = vst [vmem:[%s3 + $0x38] sm:$0xff] %v247
  %264 = vst [vmem:[%s3 + $0x40] sm:$0xff] %v248
  %265 = vst [vmem:[%s3 + $0x48] sm:$0xff] %v249
  %266 = vst [vmem:[%s3 + $0x50] sm:$0xff] %v250
  %267 = vst [vmem:[%s3 + $0x58] sm:$0xff] %v251
  %268 = vst [vmem:[%s3 + $0x60] sm:$0xff] %v252
  %269 = vst [vmem:[%s3 + $0x68] sm:$0xff] %v253
  %270 = vst [vmem:[%s3 + $0x70] sm:$0xff] %v254
  %271 = vst [vmem:[%s3 + $0x78] sm:$0xff] %v255
  // Predicated region
  $region14: #{repvgg_stage_forward.3} parent=0 // pred_check
    _
  $region15: #{repvgg_stage_forward.3} parent=0 // pred_check_branch
    %273 = sbr.rel (0) target = $region17
  $region16: #{repvgg_stage_forward.3} parent=0 // pred_region
    _
  $region17: #{repvgg_stage_forward.3} parent=0 // pred_fallthru
    _
  // Predicated region
  $region18: #{repvgg_stage_forward.3} parent=0 // pred_check
    _
  $region19: #{repvgg_stage_forward.3} parent=0 // pred_check_branch
    %275 = sbr.rel (0) target = $region21
  $region20: #{repvgg_stage_forward.3} parent=0 // pred_region
    _
  $region21: #{repvgg_stage_forward.3} parent=0 // pred_fallthru
    _

</llo_original>
